<compile_context>
chip_gen: v7x
topology: tpu7x:2x2x1
jax: 0.10.0
libtpu: 0.0.40
codegen_flags: <defaults>
</compile_context>

<pallas_src>
import jax
import jax.numpy as jnp
from jax.experimental import pallas as pl
from jax.experimental.pallas import tpu as pltpu


def _round_up(n, m):
    return (n + m - 1) // m * m


def _cdiv(a, b):
    return -(-a // b)


def fc_encoder_kernel(x_ref, w1_ref, w2_ref, w3_ref, wh_ref, b_ref, out_ref):
    """3 x (Linear+ReLU) followed by the fused latent-head matmul.

    Weights may be bf16 (v6e/v7x); accumulation / bias / ReLU are f32.
    All widths are 128-multiples, so bias slices are lane-aligned.
    """
    b = b_ref[...]  # (4, W) packed f32 biases: rows = [b1, b2, b3, b_heads]

    h = jnp.dot(x_ref[...], w1_ref[...], preferred_element_type=jnp.float32)
    h = jnp.maximum(h + b[0:1, :h.shape[1]], 0.0)

    h = jnp.dot(h.astype(w2_ref.dtype), w2_ref[...],
                preferred_element_type=jnp.float32)
    h = jnp.maximum(h + b[1:2, :h.shape[1]], 0.0)

    h = jnp.dot(h.astype(w3_ref.dtype), w3_ref[...],
                preferred_element_type=jnp.float32)
    h = jnp.maximum(h + b[2:3, :h.shape[1]], 0.0)

    out = jnp.dot(h.astype(wh_ref.dtype), wh_ref[...],
                  preferred_element_type=jnp.float32)
    out_ref[...] = out + b[3:4, :out.shape[1]]


def prepare_encoder_params(params, input_dim, latent_dim,
                           compute_dtype=jnp.float32):
    """One-time packing of PyTorch-layout params ((out, in) weights).

    - transpose to (in, out)
    - zero-pad every output width to a multiple of 128 (lane-dense vregs,
      unmasked bias adds); padded rows of the next weight are zero so the
      padding contributes exactly 0 through the whole chain
    - fuse the two latent heads into one (h3p, 128) matmul
    - pack all 5 biases into a single (4, W) f32 tile
    - optionally cast matmul operands to bf16 (v6e/v7x)
    """
    (w1, b1), (w2, b2), (w3, b3), (wm, bm), (wv, bv) = params
    h1, h2, h3 = w1.shape[0], w2.shape[0], w3.shape[0]

    h1p = _round_up(h1, 128)
    h2p = _round_up(h2, 128)
    h3p = _round_up(h3, 128)
    out_dim = 2 * latent_dim
    out_pad = _round_up(out_dim, 128)
    w_bias = max(h1p, h2p, h3p, out_pad)

    w1t = jnp.zeros((input_dim, h1p), jnp.float32).at[:, :h1].set(w1.T)
    w2t = jnp.zeros((h1p, h2p), jnp.float32).at[:h1, :h2].set(w2.T)
    w3t = jnp.zeros((h2p, h3p), jnp.float32).at[:h2, :h3].set(w3.T)

    # Fused latent heads [z_mean | z_var], zero-padded to 128 lanes.
    wh = jnp.zeros((h3p, out_pad), jnp.float32)
    wh = wh.at[:h3, :latent_dim].set(wm.T).at[:h3, latent_dim:out_dim].set(wv.T)

    w1t, w2t, w3t, wh = (w.astype(compute_dtype) for w in (w1t, w2t, w3t, wh))

    # All biases in one tile (one operand instead of five); stays f32.
    bias = jnp.zeros((4, w_bias), jnp.float32)
    bias = bias.at[0, :h1].set(b1).at[1, :h2].set(b2).at[2, :h3].set(b3)
    bias = bias.at[3, :latent_dim].set(bm).at[3, latent_dim:out_dim].set(bv)

    meta = dict(input_dim=input_dim, latent_dim=latent_dim,
                out_pad=out_pad, hpad=(h1p, h2p, h3p),
                compute_dtype=compute_dtype)
    return (w1t, w2t, w3t, wh, bias), meta


def _choose_batch_tiling(B, cap=512, split_threshold=128):
    """Divisor-aware batch tiling: <= cap rows/step, minimal tail padding,
    and >= 2 grid steps for large batches so both v7x TensorCores are used."""
    if B <= split_threshold:
        return min(_round_up(B, 8), cap), 1
    steps = max(2, _cdiv(B, cap))
    tile_b = _round_up(_cdiv(B, steps), 8)
    steps = _cdiv(B, tile_b)
    return tile_b, steps


def fc_encoder_forward(x, packed, meta):
    """x: (B, seq_len, alphabet_size).  Returns (mu, logvar) in f32."""
    w1t, w2t, w3t, wh, bias = packed
    input_dim = meta["input_dim"]
    latent_dim = meta["latent_dim"]
    out_pad = meta["out_pad"]
    h1p, h2p, h3p = meta["hpad"]
    cdt = meta["compute_dtype"]

    B = x.shape[0]
    x_flat = x.reshape(B, -1).astype(cdt)  # same semantics as torch .view(B,-1)
    assert x_flat.shape[1] == input_dim

    tile_b, steps = _choose_batch_tiling(B)
    b_pad = tile_b * steps
    if b_pad != B:
        # Only the cheap batch-row padding; no K padding of x.
        x_p = jnp.zeros((b_pad, input_dim), cdt).at[:B, :].set(x_flat)
    else:
        x_p = x_flat

    # Deeper buffering only when the grid is long enough to benefit.
    if steps >= 4:
        x_spec = pl.BlockSpec((tile_b, input_dim), lambda i: (i, 0),
                              pipeline_mode=pl.Buffered(3))
        o_spec = pl.BlockSpec((tile_b, out_pad), lambda i: (i, 0),
                              pipeline_mode=pl.Buffered(3))
    else:
        x_spec = pl.BlockSpec((tile_b, input_dim), lambda i: (i, 0))
        o_spec = pl.BlockSpec((tile_b, out_pad), lambda i: (i, 0))

    flops = 2 * b_pad * (input_dim * h1p + h1p * h2p + h2p * h3p + h3p * out_pad)
    bytes_accessed = int(
        x_p.size * x_p.dtype.itemsize
        + sum(int(w.size) * w.dtype.itemsize for w in (w1t, w2t, w3t, wh))
        + bias.size * 4
        + b_pad * out_pad * 4)

    out = pl.pallas_call(
        fc_encoder_kernel,
        out_shape=jax.ShapeDtypeStruct((b_pad, out_pad), jnp.float32),
        grid_spec=pltpu.PrefetchScalarGridSpec(
            num_scalar_prefetch=0,
            grid=(steps,),
            in_specs=[
                x_spec,                                              # x tile
                pl.BlockSpec((input_dim, h1p), lambda i: (0, 0)),    # w1 (full)
                pl.BlockSpec((h1p, h2p), lambda i: (0, 0)),          # w2 (full)
                pl.BlockSpec((h2p, h3p), lambda i: (0, 0)),          # w3 (full)
                pl.BlockSpec((h3p, out_pad), lambda i: (0, 0)),      # fused heads
                pl.BlockSpec((4, bias.shape[1]), lambda i: (0, 0)),  # biases
            ],
            out_specs=o_spec,
        ),
        compiler_params=pltpu.CompilerParams(
            dimension_semantics=("parallel",)),
        cost_estimate=pl.CostEstimate(flops=flops, transcendentals=0,
                                      bytes_accessed=bytes_accessed),
    )(x_p, w1t, w2t, w3t, wh, bias)

    mu = out[:B, :latent_dim]
    logvar = out[:B, latent_dim:2 * latent_dim]
    return mu, logvar


def init_params(key, input_dim, hidden, latent_dim):
    """Deterministic Linear params; weight shape (out, in) like PyTorch."""
    def linear(k, fan_in, fan_out):
        kw, kb = jax.random.split(k)
        bound = 1.0 / jnp.sqrt(fan_in)
        w = jax.random.uniform(kw, (fan_out, fan_in), jnp.float32, -bound, bound)
        b = jax.random.uniform(kb, (fan_out,), jnp.float32, -bound, bound)
        return w, b

    keys = jax.random.split(key, 5)
    dims = [input_dim] + hidden
    p = []
    for i in range(3):
        p.append(linear(keys[i], dims[i], dims[i + 1]))
    p.append(linear(keys[3], hidden[-1], latent_dim))  # z_mean
    p.append(linear(keys[4], hidden[-1], latent_dim))  # z_var
    return p


def reference_forward(x, params):
    """Plain-JAX reference mirroring the PyTorch module (eval mode, f32)."""
    (w1, b1), (w2, b2), (w3, b3), (wm, bm), (wv, bv) = params
    h = x.reshape(x.shape[0], -1)
    h = jnp.maximum(h @ w1.T + b1, 0.0)
    h = jnp.maximum(h @ w2.T + b2, 0.0)
    h = jnp.maximum(h @ w3.T + b3, 0.0)
    return h @ wm.T + bm, h @ wv.T + bv


if __name__ == "__main__":
    # Small shapes consistent with the module's forward.
    batch = 4
    seq_len = 8
    alphabet_size = 21
    encoder_hidden = [32, 32, 32]
    latent_dim = 16
    input_dim = seq_len * alphabet_size  # n_conditions = 0

    # bf16 matmul operands on v6e / v7x (f32 accumulation); f32 elsewhere.
    kind = jax.devices()[0].device_kind.lower()
    use_bf16 = any(t in kind for t in ("v6", "v7", "tpu7"))
    compute_dtype = jnp.bfloat16 if use_bf16 else jnp.float32
    atol = 5e-2 if use_bf16 else 1e-5
    rtol = 5e-2 if use_bf16 else 1e-5

    key = jax.random.PRNGKey(0)
    kx, kp = jax.random.split(key)
    x = jax.random.normal(kx, (batch, seq_len, alphabet_size), jnp.float32)
    params = init_params(kp, input_dim, encoder_hidden, latent_dim)

    # Hoisted one-time packing (transposes, head fusion, bias packing, padding).
    packed, meta = prepare_encoder_params(params, input_dim, latent_dim,
                                          compute_dtype=compute_dtype)
    packed = jax.block_until_ready(packed)

    mu, logvar = fc_encoder_forward(x, packed, meta)
    mu, logvar = jax.block_until_ready((mu, logvar))

    mu_ref, logvar_ref = reference_forward(x, params)
    assert mu.shape == (batch, latent_dim) and logvar.shape == (batch, latent_dim)
    assert jnp.allclose(mu, mu_ref, atol=atol, rtol=rtol)
    assert jnp.allclose(logvar, logvar_ref, atol=atol, rtol=rtol)

    print("KERNEL_OK")
</pallas_src>

<mosaic_0001>
module attributes {stable_mosaic.version = 11 : i64} {
  func.func @fc_encoder_kernel(%arg0: i32, %arg1: memref<8x168xf32, #tpu.memory_space<vmem>>, %arg2: memref<168x128xf32, #tpu.memory_space<vmem>>, %arg3: memref<128x128xf32, #tpu.memory_space<vmem>>, %arg4: memref<128x128xf32, #tpu.memory_space<vmem>>, %arg5: memref<128x128xf32, #tpu.memory_space<vmem>>, %arg6: memref<4x128xf32, #tpu.memory_space<vmem>>, %arg7: memref<8x128xf32, #tpu.memory_space<vmem>>) attributes {dimension_semantics = [#tpu.dimension_semantics<parallel>], iteration_bounds = array<i64: 1>, scalar_prefetch = 0 : i64, scratch_operands = 0 : i64, tpu.core_type = #tpu.core_type<tc>, window_params = [{transform_indices = @transform_0, window_bounds = array<i64: 8, 168>}, {pipeline_mode = #tpu.pipeline_mode<synchronous>, transform_indices = @transform_1, window_bounds = array<i64: 168, 128>}, {pipeline_mode = #tpu.pipeline_mode<synchronous>, transform_indices = @transform_2, window_bounds = array<i64: 128, 128>}, {pipeline_mode = #tpu.pipeline_mode<synchronous>, transform_indices = @transform_3, window_bounds = array<i64: 128, 128>}, {pipeline_mode = #tpu.pipeline_mode<synchronous>, transform_indices = @transform_4, window_bounds = array<i64: 128, 128>}, {pipeline_mode = #tpu.pipeline_mode<synchronous>, transform_indices = @transform_5, window_bounds = array<i64: 4, 128>}, {transform_indices = @transform_6, window_bounds = array<i64: 8, 128>}]} {
    %c0 = arith.constant 0 : index
    %c0_0 = arith.constant 0 : index
    %0 = vector.load %arg6[%c0, %c0_0] : memref<4x128xf32, #tpu.memory_space<vmem>>, vector<4x128xf32>
    %c0_1 = arith.constant 0 : index
    %c0_2 = arith.constant 0 : index
    %1 = vector.load %arg1[%c0_1, %c0_2] : memref<8x168xf32, #tpu.memory_space<vmem>>, vector<8x168xf32>
    %c0_3 = arith.constant 0 : index
    %c0_4 = arith.constant 0 : index
    %2 = vector.load %arg2[%c0_3, %c0_4] : memref<168x128xf32, #tpu.memory_space<vmem>>, vector<168x128xf32>
    %cst = arith.constant dense<0.000000e+00> : vector<8x128xf32>
    %3 = tpu.matmul %1, %2, %cst {dimension_numbers = #tpu.dot_dimension_numbers<[1], [0], [0], [1], [0, 0, 1, 1], [], []>} : vector<8x168xf32>, vector<168x128xf32>, vector<8x128xf32> -> vector<8x128xf32>
    %4 = vector.extract_strided_slice %0 {offsets = [0, 0], sizes = [1, 128], strides = [1, 1]} : vector<4x128xf32> to vector<1x128xf32>
    %5 = vector.broadcast %4 : vector<1x128xf32> to vector<8x128xf32>
    %6 = arith.addf %3, %5 : vector<8x128xf32>
    %cst_5 = arith.constant 0.000000e+00 : f32
    %7 = vector.broadcast %cst_5 : f32 to vector<8x128xf32>
    %8 = arith.maximumf %6, %7 : vector<8x128xf32>
    %c0_6 = arith.constant 0 : index
    %c0_7 = arith.constant 0 : index
    %9 = vector.load %arg3[%c0_6, %c0_7] : memref<128x128xf32, #tpu.memory_space<vmem>>, vector<128x128xf32>
    %cst_8 = arith.constant dense<0.000000e+00> : vector<8x128xf32>
    %10 = tpu.matmul %8, %9, %cst_8 {dimension_numbers = #tpu.dot_dimension_numbers<[1], [0], [0], [1], [0, 0, 1, 1], [], []>} : vector<8x128xf32>, vector<128x128xf32>, vector<8x128xf32> -> vector<8x128xf32>
    %11 = vector.extract_strided_slice %0 {offsets = [1, 0], sizes = [1, 128], strides = [1, 1]} : vector<4x128xf32> to vector<1x128xf32>
    %12 = vector.broadcast %11 : vector<1x128xf32> to vector<8x128xf32>
    %13 = arith.addf %10, %12 : vector<8x128xf32>
    %cst_9 = arith.constant 0.000000e+00 : f32
    %14 = vector.broadcast %cst_9 : f32 to vector<8x128xf32>
    %15 = arith.maximumf %13, %14 : vector<8x128xf32>
    %c0_10 = arith.constant 0 : index
    %c0_11 = arith.constant 0 : index
    %16 = vector.load %arg4[%c0_10, %c0_11] : memref<128x128xf32, #tpu.memory_space<vmem>>, vector<128x128xf32>
    %cst_12 = arith.constant dense<0.000000e+00> : vector<8x128xf32>
    %17 = tpu.matmul %15, %16, %cst_12 {dimension_numbers = #tpu.dot_dimension_numbers<[1], [0], [0], [1], [0, 0, 1, 1], [], []>} : vector<8x128xf32>, vector<128x128xf32>, vector<8x128xf32> -> vector<8x128xf32>
    %18 = vector.extract_strided_slice %0 {offsets = [2, 0], sizes = [1, 128], strides = [1, 1]} : vector<4x128xf32> to vector<1x128xf32>
    %19 = vector.broadcast %18 : vector<1x128xf32> to vector<8x128xf32>
    %20 = arith.addf %17, %19 : vector<8x128xf32>
    %cst_13 = arith.constant 0.000000e+00 : f32
    %21 = vector.broadcast %cst_13 : f32 to vector<8x128xf32>
    %22 = arith.maximumf %20, %21 : vector<8x128xf32>
    %c0_14 = arith.constant 0 : index
    %c0_15 = arith.constant 0 : index
    %23 = vector.load %arg5[%c0_14, %c0_15] : memref<128x128xf32, #tpu.memory_space<vmem>>, vector<128x128xf32>
    %cst_16 = arith.constant dense<0.000000e+00> : vector<8x128xf32>
    %24 = tpu.matmul %22, %23, %cst_16 {dimension_numbers = #tpu.dot_dimension_numbers<[1], [0], [0], [1], [0, 0, 1, 1], [], []>} : vector<8x128xf32>, vector<128x128xf32>, vector<8x128xf32> -> vector<8x128xf32>
    %25 = vector.extract_strided_slice %0 {offsets = [3, 0], sizes = [1, 128], strides = [1, 1]} : vector<4x128xf32> to vector<1x128xf32>
    %26 = vector.broadcast %25 : vector<1x128xf32> to vector<8x128xf32>
    %27 = arith.addf %24, %26 : vector<8x128xf32>
    %c0_17 = arith.constant 0 : index
    %c0_18 = arith.constant 0 : index
    %28 = vector.load %arg7[%c0_17, %c0_18] : memref<8x128xf32, #tpu.memory_space<vmem>>, vector<8x128xf32>
    tpu.vector_store %arg7[%c0_17, %c0_18], %27 {strides = array<i32>} : memref<8x128xf32, #tpu.memory_space<vmem>>, vector<8x128xf32>,
    return
  }
  func.func @transform_0(%arg0: i32) -> (i32, i32) {
    %c0_i32 = arith.constant 0 : i32
    %c0_i32_0 = arith.constant 0 : i32
    return %arg0, %c0_i32 : i32, i32
  }
  func.func @transform_1(%arg0: i32) -> (i32, i32) {
    %c0_i32 = arith.constant 0 : i32
    %c0_i32_0 = arith.constant 0 : i32
    %c0_i32_1 = arith.constant 0 : i32
    return %c0_i32, %c0_i32_0 : i32, i32
  }
  func.func @transform_2(%arg0: i32) -> (i32, i32) {
    %c0_i32 = arith.constant 0 : i32
    %c0_i32_0 = arith.constant 0 : i32
    %c0_i32_1 = arith.constant 0 : i32
    return %c0_i32, %c0_i32_0 : i32, i32
  }
  func.func @transform_3(%arg0: i32) -> (i32, i32) {
    %c0_i32 = arith.constant 0 : i32
    %c0_i32_0 = arith.constant 0 : i32
    %c0_i32_1 = arith.constant 0 : i32
    return %c0_i32, %c0_i32_0 : i32, i32
  }
  func.func @transform_4(%arg0: i32) -> (i32, i32) {
    %c0_i32 = arith.constant 0 : i32
    %c0_i32_0 = arith.constant 0 : i32
    %c0_i32_1 = arith.constant 0 : i32
    return %c0_i32, %c0_i32_0 : i32, i32
  }
  func.func @transform_5(%arg0: i32) -> (i32, i32) {
    %c0_i32 = arith.constant 0 : i32
    %c0_i32_0 = arith.constant 0 : i32
    %c0_i32_1 = arith.constant 0 : i32
    return %c0_i32, %c0_i32_0 : i32, i32
  }
  func.func @transform_6(%arg0: i32) -> (i32, i32) {
    %c0_i32 = arith.constant 0 : i32
    %c0_i32_0 = arith.constant 0 : i32
    return %arg0, %c0_i32 : i32, i32
  }
}

</mosaic_0001>

<llo_original>
// kernel: tpu_custom_call.1
$region0: #{tpu_custom_call.1}
  #allocation0 [shape = 'u32[]', space=smem, size = 0x4, offset = 0x4, fixed_abs, tag = 'smem constant byte address 0x4 - core index']
  #allocation1 [shape = 'u32[144,128]{1,0:T(1,128)}', space=vmem, size = 0x12000, scoped, tag = 'internal scratch']
  %s0 = inlined_call_operand.hbm [shape: f32[8,168], index: 0, kind: input, shape index: {}]
  %s1 = inlined_call_operand.hbm [shape: f32[168,128], index: 1, kind: input, shape index: {}]
  %s2 = inlined_call_operand.hbm [shape: f32[128,128], index: 2, kind: input, shape index: {}]
  %s3 = inlined_call_operand.hbm [shape: f32[128,128], index: 3, kind: input, shape index: {}]
  %s4 = inlined_call_operand.hbm [shape: f32[128,128], index: 4, kind: input, shape index: {}]
  %s5 = inlined_call_operand.vmem [shape: f32[4,128], index: 5, kind: input, shape index: {}]
  %s6 = inlined_call_operand.hbm [shape: f32[8,128], index: 6, kind: output, shape index: {}]
  %s7 = sld [smem:[#allocation0]]
  $region54: #{tpu_custom_call.1} parent=0
    _
  %s9 = ssub.s32 1, %s7
  %s10 = scalar_select 0, %s9, %s7
  $region1: #{tpu_custom_call.1} parent=0
    #allocation2 [shape = 'u8[8192]{0}', space=vmem, size = 0x2000, scoped, tag = 'input window, operand 0, single buffered']
    #allocation3 [shape = 's32[1]{0}', space=sflag, size = 0x4, scoped, tag = 'scoped memory for tpu_custom_call.1']
    #allocation4 [shape = 's32[1]{0}', space=sflag, size = 0x4, scoped, tag = 'scoped memory for tpu_custom_call.1']
    #allocation5 [shape = 'u8[86016]{0}', space=vmem, size = 0x15000, scoped, tag = 'input window, operand 1, single buffered']
    #allocation6 [shape = 's32[1]{0}', space=sflag, size = 0x4, scoped, tag = 'scoped memory for tpu_custom_call.1']
    #allocation7 [shape = 'u8[65536]{0}', space=vmem, size = 0x10000, scoped, tag = 'input window, operand 2, single buffered']
    #allocation8 [shape = 'u8[65536]{0}', space=vmem, size = 0x10000, scoped, tag = 'input window, operand 3, single buffered']
    #allocation9 [shape = 's32[1]{0}', space=sflag, size = 0x4, scoped, tag = 'scoped memory for tpu_custom_call.1']
    #allocation10 [shape = 'u8[65536]{0}', space=vmem, size = 0x10000, scoped, tag = 'input window, operand 4, single buffered']
    #allocation11 [shape = 'u8[4096]{0}', space=vmem, size = 0x1000, scoped, tag = 'output window, operand 0, single buffered']
    %11 = vsyncpa [#allocation3], 0
    %12 = vsyncpa [#allocation6], 0
    %13 = vsyncpa [#allocation9], 0
    %14 = vsyncpa [#allocation4], 0
    // Predicated region
    $region2: #{tpu_custom_call.1} parent=1 // pred_check
      _
    $region3: #{tpu_custom_call.1} parent=1 // pred_check_branch
      %16 = sbr.rel (0) target = $region5
    $region4: #{tpu_custom_call.1} parent=1 // pred_region
      %s18 = ssub.s32 256, 256
      %19 = vsyncadd [#allocation3], %s18
      %s21 = sshll.u32 [#allocation2], 4
      %s22 = int_to_ptr.vmem [resolvable:$true] %s21
      %24 = dma.hbm_to_vmem [thread:$0]  %s0, 256, %s22, [#allocation3]
    $region5: #{tpu_custom_call.1} parent=1 // pred_fallthru
      _
    // Predicated region
    $region6: #{tpu_custom_call.1} parent=1 // pred_check
      _
    $region7: #{tpu_custom_call.1} parent=1 // pred_check_branch
      %26 = sbr.rel (0) target = $region9
    $region8: #{tpu_custom_call.1} parent=1 // pred_region
      %s28 = ssub.s32 2688, 2688
      %29 = vsyncadd [#allocation6], %s28
      %s30 = sshll.u32 [#allocation5], 4
      %s31 = int_to_ptr.vmem [resolvable:$true] %s30
      %36 = dma.hbm_to_vmem [thread:$0]  %s1, 2688, %s31, [#allocation6], 128, 128, 8
    $region9: #{tpu_custom_call.1} parent=1 // pred_fallthru
      _
    // Predicated region
    $region10: #{tpu_custom_call.1} parent=1 // pred_check
      _
    $region11: #{tpu_custom_call.1} parent=1 // pred_check_branch
      %38 = sbr.rel (0) target = $region13
    $region12: #{tpu_custom_call.1} parent=1 // pred_region
      %s40 = ssub.s32 2048, 2048
      %41 = vsyncadd [#allocation6], %s40
      %s42 = sshll.u32 [#allocation7], 4
      %s43 = int_to_ptr.vmem [resolvable:$true] %s42
      %48 = dma.hbm_to_vmem [thread:$0]  %s2, 2048, %s43, [#allocation6], 128, 128, 8
    $region13: #{tpu_custom_call.1} parent=1 // pred_fallthru
      _
    // Predicated region
    $region14: #{tpu_custom_call.1} parent=1 // pred_check
      _
    $region15: #{tpu_custom_call.1} parent=1 // pred_check_branch
      %50 = sbr.rel (0) target = $region17
    $region16: #{tpu_custom_call.1} parent=1 // pred_region
      %s52 = ssub.s32 2048, 2048
      %53 = vsyncadd [#allocation9], %s52
      %s54 = sshll.u32 [#allocation8], 4
      %s55 = int_to_ptr.vmem [resolvable:$true] %s54
      %60 = dma.hbm_to_vmem [thread:$0]  %s3, 2048, %s55, [#allocation9], 128, 128, 8
    $region17: #{tpu_custom_call.1} parent=1 // pred_fallthru
      _
    // Predicated region
    $region18: #{tpu_custom_call.1} parent=1 // pred_check
      _
    $region19: #{tpu_custom_call.1} parent=1 // pred_check_branch
      %62 = sbr.rel (0) target = $region21
    $region20: #{tpu_custom_call.1} parent=1 // pred_region
      %s64 = ssub.s32 2048, 2048
      %65 = vsyncadd [#allocation9], %s64
      %s66 = sshll.u32 [#allocation10], 4
      %s67 = int_to_ptr.vmem [resolvable:$true] %s66
      %72 = dma.hbm_to_vmem [thread:$0]  %s4, 2048, %s67, [#allocation9], 128, 128, 8
    $region21: #{tpu_custom_call.1} parent=1 // pred_fallthru
      _
    // Predicated region
    $region22: #{tpu_custom_call.1} parent=1 // pred_check
      _
    $region23: #{tpu_custom_call.1} parent=1 // pred_check_branch
      %74 = sbr.rel (0) target = $region25
    $region24: #{tpu_custom_call.1} parent=1 // pred_region
      _
    $region25: #{tpu_custom_call.1} parent=1 // pred_fallthru
      _
    // Predicated region
    $region26: #{tpu_custom_call.1} parent=1 // pred_check
      _
    $region27: #{tpu_custom_call.1} parent=1 // pred_check_branch
      %76 = sbr.rel (0) target = $region29
    $region28: #{tpu_custom_call.1} parent=1 // pred_region
      %77 = dma.done [#allocation3], 256
    $region29: #{tpu_custom_call.1} parent=1 // pred_fallthru
      _
    // Predicated region
    $region30: #{tpu_custom_call.1} parent=1 // pred_check
      _
    $region31: #{tpu_custom_call.1} parent=1 // pred_check_branch
      %79 = sbr.rel (0) target = $region33
    $region32: #{tpu_custom_call.1} parent=1 // pred_region
      %80 = dma.done [#allocation6], 2688
    $region33: #{tpu_custom_call.1} parent=1 // pred_fallthru
      _
    // Predicated region
    $region34: #{tpu_custom_call.1} parent=1 // pred_check
      _
    $region35: #{tpu_custom_call.1} parent=1 // pred_check_branch
      %82 = sbr.rel (0) target = $region37
    $region36: #{tpu_custom_call.1} parent=1 // pred_region
      %83 = dma.done [#allocation6], 2048
    $region37: #{tpu_custom_call.1} parent=1 // pred_fallthru
      _
    // Predicated region
    $region38: #{tpu_custom_call.1} parent=1 // pred_check
      _
    $region39: #{tpu_custom_call.1} parent=1 // pred_check_branch
      %85 = sbr.rel (0) target = $region41
    $region40: #{tpu_custom_call.1} parent=1 // pred_region
      %86 = dma.done [#allocation9], 2048
    $region41: #{tpu_custom_call.1} parent=1 // pred_fallthru
      _
    // Predicated region
    $region42: #{tpu_custom_call.1} parent=1 // pred_check
      _
    $region43: #{tpu_custom_call.1} parent=1 // pred_check_branch
      %88 = sbr.rel (0) target = $region45
    $region44: #{tpu_custom_call.1} parent=1 // pred_region
      %89 = dma.done [#allocation9], 2048
    $region45: #{tpu_custom_call.1} parent=1 // pred_fallthru
      _
    %v90 = vld [vmem:[%s5] sm:$0xf]
    %v91 = vld [vmem:[#allocation2] sm:$0xff]
    %v92 = vld [vmem:[#allocation2 + $0x8] sm:$0xff]
    %v93 = vld [vmem:[#allocation5] sm:$0xff]
    %v94 = vld [vmem:[#allocation5 + $0x8] sm:$0xff]
    %v95 = vld [vmem:[#allocation5 + $0x10] sm:$0xff]
    %v96 = vld [vmem:[#allocation5 + $0x18] sm:$0xff]
    %v97 = vld [vmem:[#allocation5 + $0x20] sm:$0xff]
    %v98 = vld [vmem:[#allocation5 + $0x28] sm:$0xff]
    %v99 = vld [vmem:[#allocation5 + $0x30] sm:$0xff]
    %v100 = vld [vmem:[#allocation5 + $0x38] sm:$0xff]
    %v101 = vld [vmem:[#allocation5 + $0x40] sm:$0xff]
    %v102 = vld [vmem:[#allocation5 + $0x48] sm:$0xff]
    %v103 = vld [vmem:[#allocation5 + $0x50] sm:$0xff]
    %v104 = vld [vmem:[#allocation5 + $0x58] sm:$0xff]
    %v105 = vld [vmem:[#allocation5 + $0x60] sm:$0xff]
    %v106 = vld [vmem:[#allocation5 + $0x68] sm:$0xff]
    %v107 = vld [vmem:[#allocation5 + $0x70] sm:$0xff]
    %v108 = vld [vmem:[#allocation5 + $0x78] sm:$0xff]
    %v109 = vld [vmem:[#allocation5 + $0x80] sm:$0xff]
    %v110 = vld [vmem:[#allocation5 + $0x88] sm:$0xff]
    %v111 = vld [vmem:[#allocation5 + $0x90] sm:$0xff]
    %v112 = vld [vmem:[#allocation5 + $0x98] sm:$0xff]
    %v113 = vld [vmem:[#allocation5 + $0xa0] sm:$0xff]
    %v114 = vlaneseq
    %v115 = vshrl.u32 %v114, 7
    %v116 = vsub.s32 0, %v115
    %v117 = vrot.slane %v90, %v116
    %vm118 = vcmask 326656
    %v120 = vsel %vm118, %v92, 0
    %122 = vmatprep.subr.mxu0 0.0
    %123 = vmatpush1.msra.mxu0 %v93
    %124 = vmatprep.subr.mxu0 0.0
    %125 = vmatpush1.msra.mxu0 %v94
    %126 = vmatprep.subr.mxu0 0.0
    %127 = vmatpush1.msra.mxu0 %v95
    %128 = vmatprep.subr.mxu0 0.0
    %129 = vmatpush1.msra.mxu0 %v96
    %130 = vmatprep.subr.mxu0 0.0
    %131 = vmatpush1.msra.mxu0 %v97
    %132 = vmatprep.subr.mxu0 0.0
    %133 = vmatpush1.msra.mxu0 %v98
    %134 = vmatprep.subr.mxu0 0.0
    %135 = vmatpush1.msra.mxu0 %v99
    %136 = vmatprep.subr.mxu0 0.0
    %137 = vmatpush1.msra.mxu0 %v100
    %138 = vmatprep.subr.mxu0 0.0
    %139 = vmatpush1.msra.mxu0 %v101
    %140 = vmatprep.subr.mxu0 0.0
    %141 = vmatpush1.msra.mxu0 %v102
    %142 = vmatprep.subr.mxu0 0.0
    %143 = vmatpush1.msra.mxu0 %v103
    %144 = vmatprep.subr.mxu0 0.0
    %145 = vmatpush1.msra.mxu0 %v104
    %146 = vmatprep.subr.mxu0 0.0
    %147 = vmatpush1.msra.mxu0 %v105
    %148 = vmatprep.subr.mxu0 0.0
    %149 = vmatpush1.msra.mxu0 %v106
    %150 = vmatprep.subr.mxu0 0.0
    %151 = vmatpush1.msra.mxu0 %v107
    %152 = vmatprep.subr.mxu0 0.0
    %153 = vmatpush1.msra.mxu0 %v108
    %154 = vmatprep.subr.mxu0 0.0
    %155 = vmatpush1.msra.mxu0 %v109
    %156 = vmatprep.subr.mxu0 0.0
    %157 = vmatpush1.msra.mxu0 %v110
    %158 = vmatprep.subr.mxu0 0.0
    %159 = vmatpush1.msra.mxu0 %v111
    %160 = vmatprep.subr.mxu0 0.0
    %161 = vmatpush1.msra.mxu0 %v112
    %162 = vmatprep.subr.mxu0 0.0
    %163 = vmatpush1.msra.mxu0 %v113
    %164 = vmatprep.subr.mxu0 0.0
    %165 = vmatpush1.msra.mxu0 0.0
    %166 = vmatprep.subr.mxu0 0.0
    %167 = vmatpush1.msra.mxu0 0.0
    %168 = vmatprep.subr.mxu0 0.0
    %169 = vmatpush1.msra.mxu0 0.0
    %170 = vmatprep.subr.mxu0 0.0
    %171 = vmatpush1.msra.mxu0 0.0
    %172 = vmatprep.subr.mxu0 0.0
    %173 = vmatpush1.msra.mxu0 0.0
    %174 = vmatprep.subr.mxu0 0.0
    %175 = vmatpush1.msra.mxu0 0.0
    %176 = vmatprep.subr.mxu0 0.0
    %177 = vmatpush1.msra.mxu0 0.0
    %178 = vmatprep.subr.mxu0 0.0
    %179 = vmatpush1.msra.mxu0 0.0
    %180 = vmatprep.subr.mxu0 0.0
    %181 = vmatpush1.msra.mxu0 0.0
    %182 = vmatprep.subr.mxu0 0.0
    %183 = vmatpush1.msra.mxu0 0.0
    %184 = vmatprep.subr.mxu0 0.0
    %185 = vmatpush1.msra.mxu0 0.0
    %186 = vmatprep.mubr.f32.mxu0 %v120
    %187 = vmatmul.mubr.f32.gmra.mrb[0].mxu0 %v91
    %v188 = vpop.f32.mrb[0].mxu0
    %v189 = vadd.f32 %v117, %v188
    %v190 = vpop.f32.mrb[0].mxu0
    %191 = vdwg.mxu0
    %v192 = vmax.f32 %v189, 0.0
    %v193 = vld [vmem:[#allocation7] sm:$0xff]
    %v194 = vld [vmem:[#allocation7 + $0x8] sm:$0xff]
    %v195 = vld [vmem:[#allocation7 + $0x10] sm:$0xff]
    %v196 = vld [vmem:[#allocation7 + $0x18] sm:$0xff]
    %v197 = vld [vmem:[#allocation7 + $0x20] sm:$0xff]
    %v198 = vld [vmem:[#allocation7 + $0x28] sm:$0xff]
    %v199 = vld [vmem:[#allocation7 + $0x30] sm:$0xff]
    %v200 = vld [vmem:[#allocation7 + $0x38] sm:$0xff]
    %v201 = vld [vmem:[#allocation7 + $0x40] sm:$0xff]
    %v202 = vld [vmem:[#allocation7 + $0x48] sm:$0xff]
    %v203 = vld [vmem:[#allocation7 + $0x50] sm:$0xff]
    %v204 = vld [vmem:[#allocation7 + $0x58] sm:$0xff]
    %v205 = vld [vmem:[#allocation7 + $0x60] sm:$0xff]
    %v206 = vld [vmem:[#allocation7 + $0x68] sm:$0xff]
    %v207 = vld [vmem:[#allocation7 + $0x70] sm:$0xff]
    %v208 = vld [vmem:[#allocation7 + $0x78] sm:$0xff]
    %v209 = vlaneseq
    %v210 = vshrl.u32 %v209, 7
    %v211 = vsub.s32 1, %v210
    %v212 = vrot.slane %v90, %v211
    %213 = vmatprep.subr.mxu0 0.0
    %214 = vmatpush1.msra.mxu0 %v193
    %215 = vmatprep.subr.mxu0 0.0
    %216 = vmatpush1.msra.mxu0 %v194
    %217 = vmatprep.subr.mxu0 0.0
    %218 = vmatpush1.msra.mxu0 %v195
    %219 = vmatprep.subr.mxu0 0.0
    %220 = vmatpush1.msra.mxu0 %v196
    %221 = vmatprep.subr.mxu0 0.0
    %222 = vmatpush1.msra.mxu0 %v197
    %223 = vmatprep.subr.mxu0 0.0
    %224 = vmatpush1.msra.mxu0 %v198
    %225 = vmatprep.subr.mxu0 0.0
    %226 = vmatpush1.msra.mxu0 %v199
    %227 = vmatprep.subr.mxu0 0.0
    %228 = vmatpush1.msra.mxu0 %v200
    %229 = vmatprep.subr.mxu0 0.0
    %230 = vmatpush1.msra.mxu0 %v201
    %231 = vmatprep.subr.mxu0 0.0
    %232 = vmatpush1.msra.mxu0 %v202
    %233 = vmatprep.subr.mxu0 0.0
    %234 = vmatpush1.msra.mxu0 %v203
    %235 = vmatprep.subr.mxu0 0.0
    %236 = vmatpush1.msra.mxu0 %v204
    %237 = vmatprep.subr.mxu0 0.0
    %238 = vmatpush1.msra.mxu0 %v205
    %239 = vmatprep.subr.mxu0 0.0
    %240 = vmatpush1.msra.mxu0 %v206
    %241 = vmatprep.subr.mxu0 0.0
    %242 = vmatpush1.msra.mxu0 %v207
    %243 = vmatprep.subr.mxu0 0.0
    %244 = vmatpush1.msra.mxu0 %v208
    %245 = vmatprep.subr.mxu0 0.0
    %246 = vmatpush1.msra.mxu0 0.0
    %247 = vmatprep.subr.mxu0 0.0
    %248 = vmatpush1.msra.mxu0 0.0
    %249 = vmatprep.subr.mxu0 0.0
    %250 = vmatpush1.msra.mxu0 0.0
    %251 = vmatprep.subr.mxu0 0.0
    %252 = vmatpush1.msra.mxu0 0.0
    %253 = vmatprep.subr.mxu0 0.0
    %254 = vmatpush1.msra.mxu0 0.0
    %255 = vmatprep.subr.mxu0 0.0
    %256 = vmatpush1.msra.mxu0 0.0
    %257 = vmatprep.subr.mxu0 0.0
    %258 = vmatpush1.msra.mxu0 0.0
    %259 = vmatprep.subr.mxu0 0.0
    %260 = vmatpush1.msra.mxu0 0.0
    %261 = vmatprep.subr.mxu0 0.0
    %262 = vmatpush1.msra.mxu0 0.0
    %263 = vmatprep.subr.mxu0 0.0
    %264 = vmatpush1.msra.mxu0 0.0
    %265 = vmatprep.subr.mxu0 0.0
    %266 = vmatpush1.msra.mxu0 0.0
    %267 = vmatprep.subr.mxu0 0.0
    %268 = vmatpush1.msra.mxu0 0.0
    %269 = vmatprep.subr.mxu0 0.0
    %270 = vmatpush1.msra.mxu0 0.0
    %271 = vmatprep.subr.mxu0 0.0
    %272 = vmatpush1.msra.mxu0 0.0
    %273 = vmatprep.subr.mxu0 0.0
    %274 = vmatpush1.msra.mxu0 0.0
    %275 = vmatprep.subr.mxu0 0.0
    %276 = vmatpush1.msra.mxu0 0.0
    %277 = vmatprep.mubr.f32.mxu0 0.0
    %278 = vmatmul.mubr.f32.gmra.mrb[0].mxu0 %v192
    %v279 = vpop.f32.mrb[0].mxu0
    %v280 = vadd.f32 %v212, %v279
    %v281 = vpop.f32.mrb[0].mxu0
    %282 = vdwg.mxu0
    %v283 = vmax.f32 %v280, 0.0
    %v284 = vld [vmem:[#allocation8] sm:$0xff]
    %v285 = vld [vmem:[#allocation8 + $0x8] sm:$0xff]
    %v286 = vld [vmem:[#allocation8 + $0x10] sm:$0xff]
    %v287 = vld [vmem:[#allocation8 + $0x18] sm:$0xff]
    %v288 = vld [vmem:[#allocation8 + $0x20] sm:$0xff]
    %v289 = vld [vmem:[#allocation8 + $0x28] sm:$0xff]
    %v290 = vld [vmem:[#allocation8 + $0x30] sm:$0xff]
    %v291 = vld [vmem:[#allocation8 + $0x38] sm:$0xff]
    %v292 = vld [vmem:[#allocation8 + $0x40] sm:$0xff]
    %v293 = vld [vmem:[#allocation8 + $0x48] sm:$0xff]
    %v294 = vld [vmem:[#allocation8 + $0x50] sm:$0xff]
    %v295 = vld [vmem:[#allocation8 + $0x58] sm:$0xff]
    %v296 = vld [vmem:[#allocation8 + $0x60] sm:$0xff]
    %v297 = vld [vmem:[#allocation8 + $0x68] sm:$0xff]
    %v298 = vld [vmem:[#allocation8 + $0x70] sm:$0xff]
    %v299 = vld [vmem:[#allocation8 + $0x78] sm:$0xff]
    %v300 = vlaneseq
    %v301 = vshrl.u32 %v300, 7
    %v302 = vsub.s32 2, %v301
    %v303 = vrot.slane %v90, %v302
    %304 = vmatprep.subr.mxu0 0.0
    %305 = vmatpush1.msra.mxu0 %v284
    %306 = vmatprep.subr.mxu0 0.0
    %307 = vmatpush1.msra.mxu0 %v285
    %308 = vmatprep.subr.mxu0 0.0
    %309 = vmatpush1.msra.mxu0 %v286
    %310 = vmatprep.subr.mxu0 0.0
    %311 = vmatpush1.msra.mxu0 %v287
    %312 = vmatprep.subr.mxu0 0.0
    %313 = vmatpush1.msra.mxu0 %v288
    %314 = vmatprep.subr.mxu0 0.0
    %315 = vmatpush1.msra.mxu0 %v289
    %316 = vmatprep.subr.mxu0 0.0
    %317 = vmatpush1.msra.mxu0 %v290
    %318 = vmatprep.subr.mxu0 0.0
    %319 = vmatpush1.msra.mxu0 %v291
    %320 = vmatprep.subr.mxu0 0.0
    %321 = vmatpush1.msra.mxu0 %v292
    %322 = vmatprep.subr.mxu0 0.0
    %323 = vmatpush1.msra.mxu0 %v293
    %324 = vmatprep.subr.mxu0 0.0
    %325 = vmatpush1.msra.mxu0 %v294
    %326 = vmatprep.subr.mxu0 0.0
    %327 = vmatpush1.msra.mxu0 %v295
    %328 = vmatprep.subr.mxu0 0.0
    %329 = vmatpush1.msra.mxu0 %v296
    %330 = vmatprep.subr.mxu0 0.0
    %331 = vmatpush1.msra.mxu0 %v297
    %332 = vmatprep.subr.mxu0 0.0
    %333 = vmatpush1.msra.mxu0 %v298
    %334 = vmatprep.subr.mxu0 0.0
    %335 = vmatpush1.msra.mxu0 %v299
    %336 = vmatprep.subr.mxu0 0.0
    %337 = vmatpush1.msra.mxu0 0.0
    %338 = vmatprep.subr.mxu0 0.0
    %339 = vmatpush1.msra.mxu0 0.0
    %340 = vmatprep.subr.mxu0 0.0
    %341 = vmatpush1.msra.mxu0 0.0
    %342 = vmatprep.subr.mxu0 0.0
    %343 = vmatpush1.msra.mxu0 0.0
    %344 = vmatprep.subr.mxu0 0.0
    %345 = vmatpush1.msra.mxu0 0.0
    %346 = vmatprep.subr.mxu0 0.0
    %347 = vmatpush1.msra.mxu0 0.0
    %348 = vmatprep.subr.mxu0 0.0
    %349 = vmatpush1.msra.mxu0 0.0
    %350 = vmatprep.subr.mxu0 0.0
    %351 = vmatpush1.msra.mxu0 0.0
    %352 = vmatprep.subr.mxu0 0.0
    %353 = vmatpush1.msra.mxu0 0.0
    %354 = vmatprep.subr.mxu0 0.0
    %355 = vmatpush1.msra.mxu0 0.0
    %356 = vmatprep.subr.mxu0 0.0
    %357 = vmatpush1.msra.mxu0 0.0
    %358 = vmatprep.subr.mxu0 0.0
    %359 = vmatpush1.msra.mxu0 0.0
    %360 = vmatprep.subr.mxu0 0.0
    %361 = vmatpush1.msra.mxu0 0.0
    %362 = vmatprep.subr.mxu0 0.0
    %363 = vmatpush1.msra.mxu0 0.0
    %364 = vmatprep.subr.mxu0 0.0
    %365 = vmatpush1.msra.mxu0 0.0
    %366 = vmatprep.subr.mxu0 0.0
    %367 = vmatpush1.msra.mxu0 0.0
    %368 = vmatprep.mubr.f32.mxu0 0.0
    %369 = vmatmul.mubr.f32.gmra.mrb[0].mxu0 %v283
    %v370 = vpop.f32.mrb[0].mxu0
    %v371 = vadd.f32 %v303, %v370
    %v372 = vpop.f32.mrb[0].mxu0
    %373 = vdwg.mxu0
    %v374 = vmax.f32 %v371, 0.0
    %v375 = vld [vmem:[#allocation10] sm:$0xff]
    %v376 = vld [vmem:[#allocation10 + $0x8] sm:$0xff]
    %v377 = vld [vmem:[#allocation10 + $0x10] sm:$0xff]
    %v378 = vld [vmem:[#allocation10 + $0x18] sm:$0xff]
    %v379 = vld [vmem:[#allocation10 + $0x20] sm:$0xff]
    %v380 = vld [vmem:[#allocation10 + $0x28] sm:$0xff]
    %v381 = vld [vmem:[#allocation10 + $0x30] sm:$0xff]
    %v382 = vld [vmem:[#allocation10 + $0x38] sm:$0xff]
    %v383 = vld [vmem:[#allocation10 + $0x40] sm:$0xff]
    %v384 = vld [vmem:[#allocation10 + $0x48] sm:$0xff]
    %v385 = vld [vmem:[#allocation10 + $0x50] sm:$0xff]
    %v386 = vld [vmem:[#allocation10 + $0x58] sm:$0xff]
    %v387 = vld [vmem:[#allocation10 + $0x60] sm:$0xff]
    %v388 = vld [vmem:[#allocation10 + $0x68] sm:$0xff]
    %v389 = vld [vmem:[#allocation10 + $0x70] sm:$0xff]
    %v390 = vld [vmem:[#allocation10 + $0x78] sm:$0xff]
    %v391 = vlaneseq
    %v392 = vshrl.u32 %v391, 7
    %v393 = vsub.s32 3, %v392
    %v394 = vrot.slane %v90, %v393
    %395 = vmatprep.subr.mxu0 0.0
    %396 = vmatpush1.msra.mxu0 %v375
    %397 = vmatprep.subr.mxu0 0.0
    %398 = vmatpush1.msra.mxu0 %v376
    %399 = vmatprep.subr.mxu0 0.0
    %400 = vmatpush1.msra.mxu0 %v377
    %401 = vmatprep.subr.mxu0 0.0
    %402 = vmatpush1.msra.mxu0 %v378
    %403 = vmatprep.subr.mxu0 0.0
    %404 = vmatpush1.msra.mxu0 %v379
    %405 = vmatprep.subr.mxu0 0.0
    %406 = vmatpush1.msra.mxu0 %v380
    %407 = vmatprep.subr.mxu0 0.0
    %408 = vmatpush1.msra.mxu0 %v381
    %409 = vmatprep.subr.mxu0 0.0
    %410 = vmatpush1.msra.mxu0 %v382
    %411 = vmatprep.subr.mxu0 0.0
    %412 = vmatpush1.msra.mxu0 %v383
    %413 = vmatprep.subr.mxu0 0.0
    %414 = vmatpush1.msra.mxu0 %v384
    %415 = vmatprep.subr.mxu0 0.0
    %416 = vmatpush1.msra.mxu0 %v385
    %417 = vmatprep.subr.mxu0 0.0
    %418 = vmatpush1.msra.mxu0 %v386
    %419 = vmatprep.subr.mxu0 0.0
    %420 = vmatpush1.msra.mxu0 %v387
    %421 = vmatprep.subr.mxu0 0.0
    %422 = vmatpush1.msra.mxu0 %v388
    %423 = vmatprep.subr.mxu0 0.0
    %424 = vmatpush1.msra.mxu0 %v389
    %425 = vmatprep.subr.mxu0 0.0
    %426 = vmatpush1.msra.mxu0 %v390
    %427 = vmatprep.subr.mxu0 0.0
    %428 = vmatpush1.msra.mxu0 0.0
    %429 = vmatprep.subr.mxu0 0.0
    %430 = vmatpush1.msra.mxu0 0.0
    %431 = vmatprep.subr.mxu0 0.0
    %432 = vmatpush1.msra.mxu0 0.0
    %433 = vmatprep.subr.mxu0 0.0
    %434 = vmatpush1.msra.mxu0 0.0
    %435 = vmatprep.subr.mxu0 0.0
    %436 = vmatpush1.msra.mxu0 0.0
    %437 = vmatprep.subr.mxu0 0.0
    %438 = vmatpush1.msra.mxu0 0.0
    %439 = vmatprep.subr.mxu0 0.0
    %440 = vmatpush1.msra.mxu0 0.0
    %441 = vmatprep.subr.mxu0 0.0
    %442 = vmatpush1.msra.mxu0 0.0
    %443 = vmatprep.subr.mxu0 0.0
    %444 = vmatpush1.msra.mxu0 0.0
    %445 = vmatprep.subr.mxu0 0.0
    %446 = vmatpush1.msra.mxu0 0.0
    %447 = vmatprep.subr.mxu0 0.0
    %448 = vmatpush1.msra.mxu0 0.0
    %449 = vmatprep.subr.mxu0 0.0
    %450 = vmatpush1.msra.mxu0 0.0
    %451 = vmatprep.subr.mxu0 0.0
    %452 = vmatpush1.msra.mxu0 0.0
    %453 = vmatprep.subr.mxu0 0.0
    %454 = vmatpush1.msra.mxu0 0.0
    %455 = vmatprep.subr.mxu0 0.0
    %456 = vmatpush1.msra.mxu0 0.0
    %457 = vmatprep.subr.mxu0 0.0
    %458 = vmatpush1.msra.mxu0 0.0
    %459 = vmatprep.mubr.f32.mxu0 0.0
    %460 = vmatmul.mubr.f32.gmra.mrb[0].mxu0 %v374
    %v461 = vpop.f32.mrb[0].mxu0
    %v462 = vadd.f32 %v394, %v461
    %v463 = vpop.f32.mrb[0].mxu0
    %464 = vdwg.mxu0
    %465 = vst [vmem:[#allocation11] sm:$0xff] %v462
    // Predicated region
    $region46: #{tpu_custom_call.1} parent=1 // pred_check
      _
    $region47: #{tpu_custom_call.1} parent=1 // pred_check_branch
      %467 = sbr.rel (0) target = $region49
    $region48: #{tpu_custom_call.1} parent=1 // pred_region
      %s469 = ssub.s32 128, 128
      %470 = vsyncadd [#allocation4], %s469
      %s472 = sshll.u32 [#allocation11], 4
      %s473 = int_to_ptr.vmem [resolvable:$true] %s472
      %475 = dma.vmem_to_hbm [thread:$0]  %s473, 128, %s6, [#allocation4]
    $region49: #{tpu_custom_call.1} parent=1 // pred_fallthru
      _
    // Predicated region
    $region50: #{tpu_custom_call.1} parent=1 // pred_check
      _
    $region51: #{tpu_custom_call.1} parent=1 // pred_check_branch
      %477 = sbr.rel (0) target = $region53
    $region52: #{tpu_custom_call.1} parent=1 // pred_region
      %478 = dma.done [#allocation4], 128
    $region53: #{tpu_custom_call.1} parent=1 // pred_fallthru
      _
    %479 = vsyncpa [#allocation3], 1
    %480 = vsyncpa [#allocation6], 1
    %481 = vsyncpa [#allocation9], 1
    %482 = vsyncpa [#allocation4], 1

</llo_original>
